<compile_context>
chip_gen: v7x
topology: tpu7x:2x2x1
jax: 0.10.0
libtpu: 0.0.40
codegen_flags: <defaults>
</compile_context>

<pallas_src>
import jax
import jax.numpy as jnp
from jax.experimental import pallas as pl
from jax.experimental.pallas import tpu as pltpu


_TARGET_BLOCK_BYTES = 4 * 1024 * 1024   # ~4 MiB per operand block
_SMALL_BYTES = 64 * 1024                # below this, a pallas_call costs more than it saves


def _fusion_kernel(v_ref, q_ref, o_ref):
    # Elementwise fusion hot path: one (tb, D) tile on the VPU.
    o_ref[...] = v_ref[...] * q_ref[...]


def _choose_row_tile(rows: int, cols: int, itemsize: int) -> int:
    """Pick a row tile so each operand block is ~_TARGET_BLOCK_BYTES."""
    if rows * cols * itemsize <= _TARGET_BLOCK_BYTES:
        return rows                       # whole array in one block (always legal)
    tb = max(1, _TARGET_BLOCK_BYTES // (cols * itemsize))
    if tb >= 16:
        tb = (tb // 16) * 16              # sublane-aligned for f32 and bf16
    elif tb >= 8:
        tb = 8                            # minimum legal sublane multiple (f32)
    else:
        tb = rows                         # cols so wide even 8 rows overshoot; take full
    return min(tb, rows)


def _fusion_pallas_2d(v2d: jax.Array, q2d: jax.Array) -> jax.Array:
    rows, cols = v2d.shape
    tb = _choose_row_tile(rows, cols, v2d.dtype.itemsize)
    grid = (pl.cdiv(rows, tb),)           # partial edge block handled by Pallas masking
    return pl.pallas_call(
        _fusion_kernel,
        out_shape=jax.ShapeDtypeStruct((rows, cols), v2d.dtype),
        grid=grid,
        in_specs=[
            pl.BlockSpec((tb, cols), lambda i: (i, 0)),
            pl.BlockSpec((tb, cols), lambda i: (i, 0)),
        ],
        out_specs=pl.BlockSpec((tb, cols), lambda i: (i, 0)),
        compiler_params=pltpu.CompilerParams(
            dimension_semantics=("parallel",),     # elementwise -> megacore-shardable
            vmem_limit_bytes=48 * 1024 * 1024,     # 24 MiB used; fits v5e/v6e/v7x
        ),
    )(v2d, q2d)


def abstract_fusion(input_v: jax.Array, input_q: jax.Array,
                    *, force_pallas: bool = False) -> jax.Array:
    """Pallas stand-in for AbstractFusion.forward(input_v, input_q).

    Elementwise fused representation with the same shape/dtype as the inputs.
    """
    assert input_v.shape == input_q.shape, "fusion inputs must match shapes"
    assert input_v.dtype == input_q.dtype, "fusion inputs must match dtypes"

    orig_shape = input_v.shape

    # Tiny inputs (or scalars): let XLA fuse the multiply; a kernel launch is pure overhead.
    if input_v.ndim == 0 or (
            not force_pallas
            and input_v.size * input_v.dtype.itemsize < _SMALL_BYTES):
        return input_v * input_q

    # Collapse leading dims into rows, keep the last dim as lanes.
    # This is a free (metadata-only) reshape for row-major arrays — no HBM traffic.
    cols = orig_shape[-1]
    rows = input_v.size // cols
    out2d = _fusion_pallas_2d(input_v.reshape(rows, cols),
                              input_q.reshape(rows, cols))
    return out2d.reshape(orig_shape)


if __name__ == "__main__":
    key = jax.random.PRNGKey(0)

    # --- Test 1: tiny (B, D) fusion input, forced through the Pallas path
    #             so the kernel (full-array single block, D=32 < 128 lanes) runs.
    kv, kq, key = jax.random.split(key, 3)
    batch, dim = 2, 32
    v_small = jax.random.normal(kv, (batch, dim), dtype=jnp.float32)
    q_small = jax.random.normal(kq, (batch, dim), dtype=jnp.float32)
    out_small = abstract_fusion(v_small, q_small, force_pallas=True)
    jax.block_until_ready(out_small)
    assert out_small.shape == (batch, dim)
    assert jnp.allclose(out_small, v_small * q_small, atol=1e-6), "small mismatch"

    # --- Test 2: 3-D input exercising the free leading-dim collapse
    #             (rows = 4*128 = 512, cols = 384, single ~0.75 MiB block).
    kv2, kq2, key = jax.random.split(key, 3)
    v_mid = jax.random.normal(kv2, (4, 128, 384), dtype=jnp.float32)
    q_mid = jax.random.normal(kq2, (4, 128, 384), dtype=jnp.float32)
    out_mid = abstract_fusion(v_mid, q_mid)
    jax.block_until_ready(out_mid)
    assert out_mid.shape == (4, 128, 384)
    assert jnp.allclose(out_mid, v_mid * q_mid, atol=1e-6), "mid mismatch"

    # --- Test 3: multi-block pipelining with a partial edge block and no padding
    #             (rows = 5000, cols = 512 f32 -> tb = 2048 -> grid = 3, edge = 904).
    kv3, kq3, key = jax.random.split(key, 3)
    v_big = jax.random.normal(kv3, (5000, 512), dtype=jnp.float32)
    q_big = jax.random.normal(kq3, (5000, 512), dtype=jnp.float32)
    out_big = abstract_fusion(v_big, q_big)
    jax.block_until_ready(out_big)
    assert out_big.shape == (5000, 512)
    assert jnp.allclose(out_big, v_big * q_big, atol=1e-6), "big mismatch"

    # --- Test 4: tiny-input fast path (plain jnp dispatch) still correct.
    out_fast = abstract_fusion(v_small, q_small)
    jax.block_until_ready(out_fast)
    assert jnp.allclose(out_fast, v_small * q_small, atol=1e-6), "fast-path mismatch"

    print("KERNEL_OK")
</pallas_src>

<mosaic_0001>
module attributes {stable_mosaic.version = 11 : i64} {
  func.func @_fusion_kernel(%arg0: i32, %arg1: memref<2x32xf32, #tpu.memory_space<vmem>>, %arg2: memref<2x32xf32, #tpu.memory_space<vmem>>, %arg3: memref<2x32xf32, #tpu.memory_space<vmem>>) attributes {dimension_semantics = [#tpu.dimension_semantics<parallel>], iteration_bounds = array<i64: 1>, scalar_prefetch = 0 : i64, scratch_operands = 0 : i64, tpu.core_type = #tpu.core_type<tc>, window_params = [{transform_indices = @transform_0, window_bounds = array<i64: 2, 32>}, {transform_indices = @transform_1, window_bounds = array<i64: 2, 32>}, {transform_indices = @transform_2, window_bounds = array<i64: 2, 32>}]} {
    %c0 = arith.constant 0 : index
    %c0_0 = arith.constant 0 : index
    %0 = vector.load %arg1[%c0, %c0_0] : memref<2x32xf32, #tpu.memory_space<vmem>>, vector<2x32xf32>
    %c0_1 = arith.constant 0 : index
    %c0_2 = arith.constant 0 : index
    %1 = vector.load %arg2[%c0_1, %c0_2] : memref<2x32xf32, #tpu.memory_space<vmem>>, vector<2x32xf32>
    %2 = arith.mulf %0, %1 : vector<2x32xf32>
    %c0_3 = arith.constant 0 : index
    %c0_4 = arith.constant 0 : index
    %3 = vector.load %arg3[%c0_3, %c0_4] : memref<2x32xf32, #tpu.memory_space<vmem>>, vector<2x32xf32>
    tpu.vector_store %arg3[%c0_3, %c0_4], %2 {strides = array<i32>} : memref<2x32xf32, #tpu.memory_space<vmem>>, vector<2x32xf32>,
    return
  }
  func.func @transform_0(%arg0: i32) -> (i32, i32) {
    %c0_i32 = arith.constant 0 : i32
    %c0_i32_0 = arith.constant 0 : i32
    return %arg0, %c0_i32 : i32, i32
  }
  func.func @transform_1(%arg0: i32) -> (i32, i32) {
    %c0_i32 = arith.constant 0 : i32
    %c0_i32_0 = arith.constant 0 : i32
    return %arg0, %c0_i32 : i32, i32
  }
  func.func @transform_2(%arg0: i32) -> (i32, i32) {
    %c0_i32 = arith.constant 0 : i32
    %c0_i32_0 = arith.constant 0 : i32
    return %arg0, %c0_i32 : i32, i32
  }
}

</mosaic_0001>

<llo_original>
// kernel: tpu_custom_call.1
$region0: #{tpu_custom_call.1}
  #allocation0 [shape = 'u32[]', space=smem, size = 0x4, offset = 0x4, fixed_abs, tag = 'smem constant byte address 0x4 - core index']
  #allocation1 [shape = 'u32[144,128]{1,0:T(1,128)}', space=vmem, size = 0x12000, scoped, tag = 'internal scratch']
  %s0 = inlined_call_operand.hbm [shape: f32[2,32], index: 0, kind: input, shape index: {}]
  %s1 = inlined_call_operand.vmem [shape: f32[2,32], index: 1, kind: input, shape index: {}]
  %s2 = inlined_call_operand.hbm [shape: f32[2,32], index: 2, kind: output, shape index: {}]
  %s3 = sld [smem:[#allocation0]]
  $region22: #{tpu_custom_call.1} parent=0
    _
  %s5 = ssub.s32 1, %s3
  %s6 = scalar_select 0, %s5, %s3
  $region1: #{tpu_custom_call.1} parent=0
    #allocation2 [shape = 'u8[1024]{0}', space=vmem, size = 0x400, scoped, tag = 'input window, operand 0, single buffered']
    #allocation3 [shape = 's32[1]{0}', space=sflag, size = 0x4, scoped, tag = 'scoped memory for tpu_custom_call.1']
    #allocation4 [shape = 's32[1]{0}', space=sflag, size = 0x4, scoped, tag = 'scoped memory for tpu_custom_call.1']
    #allocation5 [shape = 'u8[1024]{0}', space=vmem, size = 0x400, scoped, tag = 'output window, operand 0, single buffered']
    %7 = vsyncpa [#allocation3], 0
    %8 = vsyncpa [#allocation4], 0
    // Predicated region
    $region2: #{tpu_custom_call.1} parent=1 // pred_check
      _
    $region3: #{tpu_custom_call.1} parent=1 // pred_check_branch
      %10 = sbr.rel (0) target = $region5
    $region4: #{tpu_custom_call.1} parent=1 // pred_region
      %s12 = ssub.s32 32, 32
      %13 = vsyncadd [#allocation3], %s12
      %s15 = sshll.u32 [#allocation2], 4
      %s16 = int_to_ptr.vmem [resolvable:$true] %s15
      %18 = dma.hbm_to_vmem [thread:$0]  %s0, 32, %s16, [#allocation3]
    $region5: #{tpu_custom_call.1} parent=1 // pred_fallthru
      _
    // Predicated region
    $region6: #{tpu_custom_call.1} parent=1 // pred_check
      _
    $region7: #{tpu_custom_call.1} parent=1 // pred_check_branch
      %20 = sbr.rel (0) target = $region9
    $region8: #{tpu_custom_call.1} parent=1 // pred_region
      _
    $region9: #{tpu_custom_call.1} parent=1 // pred_fallthru
      _
    // Predicated region
    $region10: #{tpu_custom_call.1} parent=1 // pred_check
      _
    $region11: #{tpu_custom_call.1} parent=1 // pred_check_branch
      %22 = sbr.rel (0) target = $region13
    $region12: #{tpu_custom_call.1} parent=1 // pred_region
      %23 = dma.done [#allocation3], 32
    $region13: #{tpu_custom_call.1} parent=1 // pred_fallthru
      _
    %v24 = vld [vmem:[#allocation2] sm:$0x3]
    %v25 = vld [vmem:[%s1] sm:$0x3]
    %v26 = vmul.f32 %v24, %v25
    %vm27 = vcmask 254976
    %28 = vst.msk [vmem:[#allocation5] sm:$0x3] %vm27, %v26
    // Predicated region
    $region14: #{tpu_custom_call.1} parent=1 // pred_check
      _
    $region15: #{tpu_custom_call.1} parent=1 // pred_check_branch
      %30 = sbr.rel (0) target = $region17
    $region16: #{tpu_custom_call.1} parent=1 // pred_region
      %s32 = ssub.s32 32, 32
      %33 = vsyncadd [#allocation4], %s32
      %s35 = sshll.u32 [#allocation5], 4
      %s36 = int_to_ptr.vmem [resolvable:$true] %s35
      %38 = dma.vmem_to_hbm [thread:$0]  %s36, 32, %s2, [#allocation4]
    $region17: #{tpu_custom_call.1} parent=1 // pred_fallthru
      _
    // Predicated region
    $region18: #{tpu_custom_call.1} parent=1 // pred_check
      _
    $region19: #{tpu_custom_call.1} parent=1 // pred_check_branch
      %40 = sbr.rel (0) target = $region21
    $region20: #{tpu_custom_call.1} parent=1 // pred_region
      %41 = dma.done [#allocation4], 32
    $region21: #{tpu_custom_call.1} parent=1 // pred_fallthru
      _
    %42 = vsyncpa [#allocation3], 1
    %43 = vsyncpa [#allocation4], 1

</llo_original>
